<compile_context>
chip_gen: v7x
topology: tpu7x:2x2x1
jax: 0.10.0
libtpu: 0.0.40
codegen_flags: <defaults>
</compile_context>

<pallas_src>
import math
from functools import lru_cache, partial

import jax
import jax.numpy as jnp
from jax.experimental import pallas as pl
from jax.experimental.pallas import tpu as pltpu

_LANE = 128
_SUBLANE = 8


def _round_up(x, m):
    return (x + m - 1) // m * m


@lru_cache(maxsize=1)
def _vmem_limit_bytes():
    """Scoped-VMEM limit: half of physical, capped at 64 MiB.
    => ~64 MiB on v5e/v6e (128 MiB physical), ~32 MiB on v7x (64 MiB)."""
    phys = 128 * 1024 * 1024
    try:
        info = pltpu.get_tpu_info()
        phys = int(getattr(info, "vmem_capacity_bytes", phys))
    except Exception:
        pass
    return max(16 * 1024 * 1024, min(phys // 2, 64 * 1024 * 1024))


def _largest_aligned_divisor(n, align, limit):
    """Largest multiple of `align` that divides n (n % align == 0) and is <= limit."""
    best = align
    d = align
    while d <= min(n, limit):
        if n % d == 0:
            best = d
        d += align
    return best


def _plan(B, cin, coutp, itemsize, budget):
    """Pick (tm, tn) for y = x @ w + b with full-extent K.
    tn == coutp means the whole (lane-padded) weight stays VMEM-resident."""

    def wset(tm, tn):
        return (2 * tm * cin * itemsize      # x block (double-buffered)
                + 2 * cin * tn * itemsize    # weight block
                + 2 * tm * tn * 4            # f32 output block
                + 2 * tn * 4)                # bias block

    # ---- N: keep the whole weight resident whenever it fits the budget ----
    tn = coutp
    if wset(_SUBLANE, tn) > budget:
        cap = coutp
        while cap > _LANE and wset(_SUBLANE, cap) > budget:
            cap -= _LANE
        tn = _largest_aligned_divisor(coutp, _LANE, max(cap, _LANE))

    # ---- M: one full-extent block for small batches, aligned tiles else ----
    if B <= 256 and wset(B, tn) <= budget:
        tm = B                                    # single block (fast path)
    else:
        tm = _SUBLANE
        for cand in (256, 128, 64, 32, 16, 8):    # >=2 blocks for B>256 (v7x 2 TCs)
            if wset(cand, tn) <= budget:
                tm = cand
                break
        tm = min(tm, max(B, 1))
    return tm, tn


def _linear_bias_kernel(x_ref, w_ref, b_ref, o_ref):
    """y = x @ w + b with the full contraction dim in-block (no accumulator)."""
    o_ref[...] = (jnp.dot(x_ref[...], w_ref[...],
                          preferred_element_type=jnp.float32)
                  + b_ref[...]).astype(o_ref.dtype)


def _fused_linear_pallas(x, w, b):
    """y = x @ w + b.
    x: (B, Cin) any float; w: (Cin, Coutp) compute dtype, Coutp % 128 == 0;
    b: (1, Coutp) f32.  Returns (B, Coutp) f32."""
    B, cin = x.shape
    cin_w, coutp = w.shape
    assert cin == cin_w and coutp % _LANE == 0

    x = x.astype(w.dtype)
    itemsize = jnp.dtype(w.dtype).itemsize
    limit = _vmem_limit_bytes()
    budget = int(limit * 0.9)
    tm, tn = _plan(B, cin, coutp, itemsize, budget)

    cost = pl.CostEstimate(
        flops=2 * B * cin * coutp, transcendentals=0,
        bytes_accessed=int(x.size * itemsize + w.size * itemsize
                           + b.size * 4 + B * coutp * 4))

    if tm == B and tn == coutp:
        # Single-block fast path: everything resident, no pipeline machinery.
        return pl.pallas_call(
            _linear_bias_kernel,
            out_shape=jax.ShapeDtypeStruct((B, coutp), jnp.float32),
            compiler_params=pltpu.CompilerParams(vmem_limit_bytes=limit),
            cost_estimate=cost,
        )(x, w, b)

    grid = (pl.cdiv(B, tm), coutp // tn)
    return pl.pallas_call(
        _linear_bias_kernel,
        out_shape=jax.ShapeDtypeStruct((B, coutp), jnp.float32),
        grid=grid,
        in_specs=[
            pl.BlockSpec((tm, cin), lambda i, j: (i, 0)),   # x: streamed once
            pl.BlockSpec((cin, tn), lambda i, j: (0, j)),   # w: resident if nn==1
            pl.BlockSpec((1, tn), lambda i, j: (0, j)),
        ],
        out_specs=pl.BlockSpec((tm, tn), lambda i, j: (i, j)),
        compiler_params=pltpu.CompilerParams(
            dimension_semantics=("parallel", "parallel"),
            vmem_limit_bytes=limit),
        cost_estimate=cost,
    )(x, w, b)


@partial(jax.jit, static_argnames=("col_slices",))
def _shared_forward(x, w_fused, b_fused, *, col_slices):
    """Shared-feature path: ONE fused matmul over all keys (128-aligned cols)."""
    y = _fused_linear_pallas(x, w_fused, b_fused)          # (B, totalp) f32
    return tuple(y[:, off:off + n] for (off, n) in col_slices)


@partial(jax.jit, static_argnames=("sizes",))
def _grouped_forward(feats, w_stack, b_stack, *, sizes):
    """dict/list element-wise path: one pallas_call with a leading key grid axis."""
    x = jnp.stack(feats, axis=0).astype(w_stack.dtype)      # (K, B, Cin)
    K, B, cin = x.shape
    _, _, cop = w_stack.shape
    itemsize = jnp.dtype(w_stack.dtype).itemsize
    limit = _vmem_limit_bytes()
    tm, _ = _plan(B, cin, cop, itemsize, int(limit * 0.9))
    nm = pl.cdiv(B, tm)

    y = pl.pallas_call(
        _linear_bias_kernel,
        out_shape=jax.ShapeDtypeStruct((K, B, cop), jnp.float32),
        grid=(K, nm),
        in_specs=[
            pl.BlockSpec((None, tm, cin), lambda g, i: (g, i, 0)),
            pl.BlockSpec((None, cin, cop), lambda g, i: (g, 0, 0)),
            pl.BlockSpec((None, 1, cop), lambda g, i: (g, 0, 0)),
        ],
        out_specs=pl.BlockSpec((None, tm, cop), lambda g, i: (g, i, 0)),
        compiler_params=pltpu.CompilerParams(
            dimension_semantics=("parallel", "parallel"),
            vmem_limit_bytes=limit),
        cost_estimate=pl.CostEstimate(
            flops=2 * K * B * cin * cop, transcendentals=0,
            bytes_accessed=int(x.size * itemsize + w_stack.size * itemsize
                               + b_stack.size * 4 + K * B * cop * 4)),
    )(x, w_stack, b_stack)
    return tuple(y[g, :, :n] for g, n in enumerate(sizes))


@partial(jax.jit, static_argnames=("n_out",))
def _single_forward(x, w_pad, b_pad, *, n_out):
    return _fused_linear_pallas(x, w_pad, b_pad)[:, :n_out]


class ClassificationHead:
    """JAX/Pallas port of wama_modules.Head.ClassificationHead."""

    def __init__(self, label_category_dict, in_channel, bias=True, *, key,
                 compute_dtype=jnp.bfloat16):
        self.in_channel = in_channel
        self.compute_dtype = compute_dtype
        self.names = list(label_category_dict.keys())
        self.sizes = [int(label_category_dict[n]) for n in self.names]
        K = len(self.names)

        bound = 1.0 / math.sqrt(in_channel)
        self.params = {}              # PyTorch-layout params (reference/export)
        for i, name in enumerate(self.names):
            n_cls = self.sizes[i]
            k_w, k_b = jax.random.split(jax.random.fold_in(key, i))
            w = jax.random.uniform(k_w, (n_cls, in_channel), jnp.float32,
                                   minval=-bound, maxval=bound)
            if bias:
                b = jax.random.uniform(k_b, (n_cls,), jnp.float32,
                                       minval=-bound, maxval=bound)
            else:
                b = jnp.zeros((n_cls,), jnp.float32)
            self.params[name] = (w, b)

        # Per-key output columns padded to 128 each => lane-aligned splits.
        cop_each = [_round_up(max(n, 1), _LANE) for n in self.sizes]
        totalp = sum(cop_each)
        cop_max = max(cop_each)

        # ---- fused params (shared-feature path): one lane-dense matmul ----
        w_fused = jnp.zeros((in_channel, totalp), compute_dtype)
        b_fused = jnp.zeros((1, totalp), jnp.float32)
        col_slices, off = [], 0
        for name, n, cpad in zip(self.names, self.sizes, cop_each):
            w, b = self.params[name]
            w_fused = w_fused.at[:, off:off + n].set(w.T.astype(compute_dtype))
            b_fused = b_fused.at[0, off:off + n].set(b)
            col_slices.append((off, n))
            off += cpad
        self.w_fused = w_fused
        self.b_fused = b_fused
        self.col_slices = tuple(col_slices)

        # ---- stacked params (dict/list element-wise path): one launch ----
        w_stack = jnp.zeros((K, in_channel, cop_max), compute_dtype)
        b_stack = jnp.zeros((K, 1, cop_max), jnp.float32)
        for g, name in enumerate(self.names):
            w, b = self.params[name]
            n = self.sizes[g]
            w_stack = w_stack.at[g, :, :n].set(w.T.astype(compute_dtype))
            b_stack = b_stack.at[g, 0, :n].set(b)
        self.w_stack = w_stack
        self.b_stack = b_stack

        # ---- per-key padded params: fallback when per-key feature shapes differ ----
        # TODO(synk): this fallback still launches one kernel per key.
        self.per_key = {}
        for name, n, cpad in zip(self.names, self.sizes, cop_each):
            w, b = self.params[name]
            wp = (jnp.zeros((in_channel, cpad), compute_dtype)
                  .at[:, :n].set(w.T.astype(compute_dtype)))
            bp = jnp.zeros((1, cpad), jnp.float32).at[0, :n].set(b)
            self.per_key[name] = (wp, bp, n)

    def __call__(self, f):
        if isinstance(f, dict):
            feats = [f[name] for name in self.names]
        elif isinstance(f, (list, tuple)):
            feats = list(f)
        else:
            # shared-feature forward: single fused pallas_call
            outs = _shared_forward(f, self.w_fused, self.b_fused,
                                   col_slices=self.col_slices)
            return dict(zip(self.names, outs))

        # element-wise forward (dict/list)
        if len({tuple(x.shape) for x in feats}) == 1:
            outs = _grouped_forward(tuple(feats), self.w_stack, self.b_stack,
                                    sizes=tuple(self.sizes))
            return dict(zip(self.names, outs))

        logits = {}
        for name, x in zip(self.names, feats):
            wp, bp, n = self.per_key[name]
            logits[name] = _single_forward(x, wp, bp, n_out=n)
        return logits


if __name__ == "__main__":
    key = jax.random.PRNGKey(0)
    k_f, k_params = jax.random.split(key)

    batch = 3
    in_channel = 32
    label_category_dict = dict(shape=4, color=3, rotten=2)

    head = ClassificationHead(label_category_dict, in_channel, bias=True,
                              key=k_params, compute_dtype=jnp.bfloat16)

    def ref_bf16(x, w, b):
        # emulate the kernel's bf16-input / f32-accumulate matmul in plain JAX
        return jnp.dot(x.astype(jnp.bfloat16), w.T.astype(jnp.bfloat16),
                       preferred_element_type=jnp.float32) + b

    ok = True

    # --- shared-tensor forward (single fused kernel) ---
    f = jax.random.normal(k_f, (batch, in_channel), jnp.float32)
    logits = head(f)
    jax.block_until_ready(logits)
    for name in label_category_dict:
        w, b = head.params[name]
        got = logits[name]
        assert got.shape == (batch, label_category_dict[name]), (name, got.shape)
        ok &= bool(jnp.allclose(got, ref_bf16(f, w, b), atol=1e-4, rtol=1e-4))
        ok &= bool(jnp.allclose(got, f @ w.T + b, atol=1e-1, rtol=1e-1))

    # --- dict element-wise forward (one stacked-key kernel) ---
    f_dict = {name: f + i for i, name in enumerate(label_category_dict)}
    logits_d = head(f_dict)
    jax.block_until_ready(logits_d)
    for name in label_category_dict:
        w, b = head.params[name]
        ok &= bool(jnp.allclose(logits_d[name], ref_bf16(f_dict[name], w, b),
                                atol=1e-4, rtol=1e-4))

    # --- list element-wise forward (one stacked-key kernel) ---
    f_list = [f * (i + 1) for i in range(len(label_category_dict))]
    logits_l = head(f_list)
    jax.block_until_ready(logits_l)
    for i, name in enumerate(label_category_dict):
        w, b = head.params[name]
        ok &= bool(jnp.allclose(logits_l[name], ref_bf16(f_list[i], w, b),
                                atol=1e-4, rtol=1e-4))

    if ok:
        print("KERNEL_OK")
    else:
        raise SystemExit("mismatch vs reference")
</pallas_src>

<mosaic_0001>
module attributes {stable_mosaic.version = 11 : i64} {
  func.func @_linear_bias_kernel(%arg0: memref<3x32xbf16, #tpu.memory_space<vmem>>, %arg1: memref<32x384xbf16, #tpu.memory_space<vmem>>, %arg2: memref<1x384xf32, #tpu.memory_space<vmem>>, %arg3: memref<3x384xf32, #tpu.memory_space<vmem>>) attributes {dimension_semantics = [], scalar_prefetch = 0 : i64, scratch_operands = 0 : i64, tpu.core_type = #tpu.core_type<tc>} {
    %c0 = arith.constant 0 : index
    %c0_0 = arith.constant 0 : index
    %0 = vector.load %arg0[%c0, %c0_0] : memref<3x32xbf16, #tpu.memory_space<vmem>>, vector<3x32xbf16>
    %c0_1 = arith.constant 0 : index
    %c0_2 = arith.constant 0 : index
    %1 = vector.load %arg1[%c0_1, %c0_2] : memref<32x384xbf16, #tpu.memory_space<vmem>>, vector<32x384xbf16>
    %cst = arith.constant dense<0.000000e+00> : vector<3x384xf32>
    %2 = tpu.matmul %0, %1, %cst {dimension_numbers = #tpu.dot_dimension_numbers<[1], [0], [0], [1], [0, 0, 1, 1], [], []>} : vector<3x32xbf16>, vector<32x384xbf16>, vector<3x384xf32> -> vector<3x384xf32>
    %c0_3 = arith.constant 0 : index
    %c0_4 = arith.constant 0 : index
    %3 = vector.load %arg2[%c0_3, %c0_4] : memref<1x384xf32, #tpu.memory_space<vmem>>, vector<1x384xf32>
    %4 = vector.broadcast %3 : vector<1x384xf32> to vector<3x384xf32>
    %5 = arith.addf %2, %4 : vector<3x384xf32>
    %c0_5 = arith.constant 0 : index
    %c0_6 = arith.constant 0 : index
    %6 = vector.load %arg3[%c0_5, %c0_6] : memref<3x384xf32, #tpu.memory_space<vmem>>, vector<3x384xf32>
    tpu.vector_store %arg3[%c0_5, %c0_6], %5 {strides = array<i32>} : memref<3x384xf32, #tpu.memory_space<vmem>>, vector<3x384xf32>,
    return
  }
}

</mosaic_0001>

<llo_original>
// kernel: _shared_forward.1
$region0: #{_shared_forward.1}
  #allocation0 [shape = 'u32[]', space=smem, size = 0x4, offset = 0x4, fixed_abs, tag = 'smem constant byte address 0x4 - core index']
  #allocation1 [shape = 'u32[144,128]{1,0:T(1,128)}', space=vmem, size = 0x12000, scoped, tag = 'internal scratch']
  %s0 = inlined_call_operand.hbm [shape: bf16[3,32], index: 0, kind: input, shape index: {}]
  %s1 = inlined_call_operand.hbm [shape: bf16[32,384], index: 1, kind: input, shape index: {}]
  %s2 = inlined_call_operand.hbm [shape: f32[1,384], index: 2, kind: input, shape index: {}]
  %s3 = inlined_call_operand.hbm [shape: f32[3,384], index: 3, kind: output, shape index: {}]
  %s4 = sld [smem:[#allocation0]]
  $region34: #{_shared_forward.1} parent=0
    _
  %s6 = ssub.s32 1, %s4
  %s7 = scalar_select 0, %s6, %s4
  $region1: #{_shared_forward.1} parent=0
    #allocation2 [shape = 'u8[1024]{0}', space=vmem, size = 0x400, scoped, tag = 'input window, operand 0, single buffered']
    #allocation3 [shape = 's32[1]{0}', space=sflag, size = 0x4, scoped, tag = 'scoped memory for _shared_forward.1']
    #allocation4 [shape = 's32[1]{0}', space=sflag, size = 0x4, scoped, tag = 'scoped memory for _shared_forward.1']
    #allocation5 [shape = 'u8[24576]{0}', space=vmem, size = 0x6000, scoped, tag = 'input window, operand 1, single buffered']
    #allocation6 [shape = 's32[1]{0}', space=sflag, size = 0x4, scoped, tag = 'scoped memory for _shared_forward.1']
    #allocation7 [shape = 'u8[1536]{0}', space=vmem, size = 0x800, scoped, tag = 'input window, operand 2, single buffered']
    #allocation8 [shape = 'u8[6144]{0}', space=vmem, size = 0x1800, scoped, tag = 'output window, operand 0, single buffered']
    %8 = vsyncpa [#allocation3], 0
    %9 = vsyncpa [#allocation6], 0
    %10 = vsyncpa [#allocation4], 0
    // Predicated region
    $region2: #{_shared_forward.1} parent=1 // pred_check
      _
    $region3: #{_shared_forward.1} parent=1 // pred_check_branch
      %12 = sbr.rel (0) target = $region5
    $region4: #{_shared_forward.1} parent=1 // pred_region
      %s14 = ssub.s32 32, 32
      %15 = vsyncadd [#allocation3], %s14
      %s17 = sshll.u32 [#allocation2], 4
      %s18 = int_to_ptr.vmem [resolvable:$true] %s17
      %20 = dma.hbm_to_vmem [thread:$0]  %s0, 32, %s18, [#allocation3]
    $region5: #{_shared_forward.1} parent=1 // pred_fallthru
      _
    // Predicated region
    $region6: #{_shared_forward.1} parent=1 // pred_check
      _
    $region7: #{_shared_forward.1} parent=1 // pred_check_branch
      %22 = sbr.rel (0) target = $region9
    $region8: #{_shared_forward.1} parent=1 // pred_region
      %s24 = ssub.s32 768, 768
      %25 = vsyncadd [#allocation6], %s24
      %s26 = sshll.u32 [#allocation5], 4
      %s27 = int_to_ptr.vmem [resolvable:$true] %s26
      %32 = dma.hbm_to_vmem [thread:$0]  %s1, 768, %s27, [#allocation6], 192, 192, 12
    $region9: #{_shared_forward.1} parent=1 // pred_fallthru
      _
    // Predicated region
    $region10: #{_shared_forward.1} parent=1 // pred_check
      _
    $region11: #{_shared_forward.1} parent=1 // pred_check_branch
      %34 = sbr.rel (0) target = $region13
    $region12: #{_shared_forward.1} parent=1 // pred_region
      %s36 = ssub.s32 48, 48
      %37 = vsyncadd [#allocation6], %s36
      %s39 = sshll.u32 [#allocation7], 4
      %s40 = int_to_ptr.vmem [resolvable:$true] %s39
      %42 = dma.hbm_to_vmem [thread:$0]  %s2, 48, %s40, [#allocation6]
    $region13: #{_shared_forward.1} parent=1 // pred_fallthru
      _
    // Predicated region
    $region14: #{_shared_forward.1} parent=1 // pred_check
      _
    $region15: #{_shared_forward.1} parent=1 // pred_check_branch
      %44 = sbr.rel (0) target = $region17
    $region16: #{_shared_forward.1} parent=1 // pred_region
      %45 = dma.done [#allocation3], 32
    $region17: #{_shared_forward.1} parent=1 // pred_fallthru
      _
    // Predicated region
    $region18: #{_shared_forward.1} parent=1 // pred_check
      _
    $region19: #{_shared_forward.1} parent=1 // pred_check_branch
      %47 = sbr.rel (0) target = $region21
    $region20: #{_shared_forward.1} parent=1 // pred_region
      %48 = dma.done [#allocation6], 768
    $region21: #{_shared_forward.1} parent=1 // pred_fallthru
      _
    // Predicated region
    $region22: #{_shared_forward.1} parent=1 // pred_check
      _
    $region23: #{_shared_forward.1} parent=1 // pred_check_branch
      %50 = sbr.rel (0) target = $region25
    $region24: #{_shared_forward.1} parent=1 // pred_region
      %51 = dma.done [#allocation6], 48
    $region25: #{_shared_forward.1} parent=1 // pred_fallthru
      _
    %v53 = vld [vmem:[#allocation2] sm:$0x3]
    %v54 = vld [vmem:[#allocation5] sm:$0xff]
    %v55 = vld [vmem:[#allocation5 + $0x8] sm:$0xf]
    %v56 = vld [vmem:[#allocation5 + $0xc] sm:$0xff]
    %v57 = vld [vmem:[#allocation5 + $0x14] sm:$0xf]
    %v58 = vld [vmem:[#allocation5 + $0x18] sm:$0xff]
    %v59 = vld [vmem:[#allocation5 + $0x20] sm:$0xf]
    %v60 = vld [vmem:[#allocation5 + $0x24] sm:$0xff]
    %v61 = vld [vmem:[#allocation5 + $0x2c] sm:$0xf]
    %v62 = vld [vmem:[#allocation7] sm:$0x7]
    %v64 = vlaneseq
    %v65 = vshrl.u32 %v64, 7
    %v66 = vsub.s32 0, %v65
    %v67 = vrot.slane %v62, %v66
    %v68 = vlaneseq
    %v69 = vshrl.u32 %v68, 7
    %v70 = vsub.s32 1, %v69
    %v71 = vrot.slane %v62, %v70
    %v72 = vlaneseq
    %v73 = vshrl.u32 %v72, 7
    %v74 = vsub.s32 2, %v73
    %v75 = vrot.slane %v62, %v74
    %v87 = vunpack.c.l.b16 %v54
    %v88 = vunpack.c.h.b16 %v54
    %v89 = vunpack.c.l.b16 %v55
    %v90 = vunpack.c.l.b16 %v56
    %v91 = vunpack.c.h.b16 %v56
    %v92 = vunpack.c.l.b16 %v57
    %v93 = vunpack.c.l.b16 %v58
    %v94 = vunpack.c.h.b16 %v58
    %v95 = vunpack.c.l.b16 %v59
    %v96 = vunpack.c.l.b16 %v60
    %v97 = vunpack.c.h.b16 %v60
    %v98 = vunpack.c.l.b16 %v61
    %v99 = vpack.c.b16 %v90, %v87
    %v100 = vpack.c.b16 %v91, %v88
    %v101 = vpack.c.b16 %v92, %v89
    %v102 = vpack.c.b16 %v96, %v93
    %v103 = vpack.c.b16 %v97, %v94
    %v104 = vpack.c.b16 %v98, %v95
    %vm111 = vcmask 261120
    %v113 = vsel %vm111, %v53, 0
    %115 = vmatprep.subr.bf16.mxu0 %v100
    %116 = vmatpush1.bf16.msra.mxu0 %v99
    %117 = vmatprep.subr.bf16.mxu0 %v103
    %118 = vmatpush1.bf16.msra.mxu0 %v102
    %119 = vmatprep.subr.bf16.mxu0 0
    %120 = vmatpush1.bf16.msra.mxu0 0
    %121 = vmatprep.subr.bf16.mxu0 0
    %122 = vmatpush1.bf16.msra.mxu0 0
    %123 = vmatprep.subr.bf16.mxu0 0
    %124 = vmatpush1.bf16.msra.mxu0 0
    %125 = vmatprep.subr.bf16.mxu0 0
    %126 = vmatpush1.bf16.msra.mxu0 0
    %127 = vmatprep.subr.bf16.mxu0 0
    %128 = vmatpush1.bf16.msra.mxu0 0
    %129 = vmatprep.subr.bf16.mxu0 0
    %130 = vmatpush1.bf16.msra.mxu0 0
    %131 = vmatprep.subr.bf16.mxu0 0
    %132 = vmatpush1.bf16.msra.mxu0 0
    %133 = vmatprep.subr.bf16.mxu0 0
    %134 = vmatpush1.bf16.msra.mxu0 0
    %135 = vmatprep.subr.bf16.mxu0 0
    %136 = vmatpush1.bf16.msra.mxu0 0
    %137 = vmatprep.subr.bf16.mxu0 0
    %138 = vmatpush1.bf16.msra.mxu0 0
    %139 = vmatprep.subr.bf16.mxu0 0
    %140 = vmatpush1.bf16.msra.mxu0 0
    %141 = vmatprep.subr.bf16.mxu0 0
    %142 = vmatpush1.bf16.msra.mxu0 0
    %143 = vmatprep.subr.bf16.mxu0 0
    %144 = vmatpush1.bf16.msra.mxu0 0
    %145 = vmatprep.subr.bf16.mxu0 0
    %146 = vmatpush1.bf16.msra.mxu0 0
    %147 = vmatprep.mubr.bf16.mxu0 0
    %148 = vmatmul.mubr.bf16.gmra.mrb[0].mxu0 %v113
    %v149 = vpop.f32.mrb[0].mxu0
    %v150 = vadd.f32 %v67, %v149
    %v151 = vpop.f32.mrb[0].mxu0
    %v152 = vadd.f32 %v71, %v151
    %v153 = vpop.f32.mrb[0].mxu0
    %v154 = vpop.f32.mrb[0].mxu0
    %155 = vdwg.mxu0
    %156 = vmatprep.subr.bf16.mxu0 0
    %157 = vmatpush1.bf16.msra.mxu0 %v101
    %158 = vmatprep.subr.bf16.mxu0 0
    %159 = vmatpush1.bf16.msra.mxu0 %v104
    %160 = vmatprep.subr.bf16.mxu0 0
    %161 = vmatpush1.bf16.msra.mxu0 0
    %162 = vmatprep.subr.bf16.mxu0 0
    %163 = vmatpush1.bf16.msra.mxu0 0
    %164 = vmatprep.subr.bf16.mxu0 0
    %165 = vmatpush1.bf16.msra.mxu0 0
    %166 = vmatprep.subr.bf16.mxu0 0
    %167 = vmatpush1.bf16.msra.mxu0 0
    %168 = vmatprep.subr.bf16.mxu0 0
    %169 = vmatpush1.bf16.msra.mxu0 0
    %170 = vmatprep.subr.bf16.mxu0 0
    %171 = vmatpush1.bf16.msra.mxu0 0
    %172 = vmatprep.subr.bf16.mxu0 0
    %173 = vmatpush1.bf16.msra.mxu0 0
    %174 = vmatprep.subr.bf16.mxu0 0
    %175 = vmatpush1.bf16.msra.mxu0 0
    %176 = vmatprep.subr.bf16.mxu0 0
    %177 = vmatpush1.bf16.msra.mxu0 0
    %178 = vmatprep.subr.bf16.mxu0 0
    %179 = vmatpush1.bf16.msra.mxu0 0
    %180 = vmatprep.subr.bf16.mxu0 0
    %181 = vmatpush1.bf16.msra.mxu0 0
    %182 = vmatprep.subr.bf16.mxu0 0
    %183 = vmatpush1.bf16.msra.mxu0 0
    %184 = vmatprep.subr.bf16.mxu0 0
    %185 = vmatpush1.bf16.msra.mxu0 0
    %186 = vmatprep.subr.bf16.mxu0 0
    %187 = vmatpush1.bf16.msra.mxu0 0
    %188 = vmatprep.mubr.bf16.mxu0 0
    %189 = vmatmul.mubr.bf16.gmra.mrb[0].mxu0 %v113
    %v190 = vpop.f32.mrb[0].mxu0
    %v191 = vadd.f32 %v75, %v190
    %v192 = vpop.f32.mrb[0].mxu0
    %v193 = vpop.f32.mrb[0].mxu0
    %v194 = vpop.f32.mrb[0].mxu0
    %195 = vdwg.mxu0
    %v198 = vcombine.low %v150, %v152
    %200 = vst [vmem:[#allocation8] sm:$0x77] %v198
    %201 = vst [vmem:[#allocation8 + $0x8] sm:$0x7] %v191
    // Predicated region
    $region26: #{_shared_forward.1} parent=1 // pred_check
      _
    $region27: #{_shared_forward.1} parent=1 // pred_check_branch
      %203 = sbr.rel (0) target = $region29
    $region28: #{_shared_forward.1} parent=1 // pred_region
      %s205 = ssub.s32 192, 192
      %206 = vsyncadd [#allocation4], %s205
      %s208 = sshll.u32 [#allocation8], 4
      %s209 = int_to_ptr.vmem [resolvable:$true] %s208
      %211 = dma.vmem_to_hbm [thread:$0]  %s209, 192, %s3, [#allocation4]
    $region29: #{_shared_forward.1} parent=1 // pred_fallthru
      _
    // Predicated region
    $region30: #{_shared_forward.1} parent=1 // pred_check
      _
    $region31: #{_shared_forward.1} parent=1 // pred_check_branch
      %213 = sbr.rel (0) target = $region33
    $region32: #{_shared_forward.1} parent=1 // pred_region
      %214 = dma.done [#allocation4], 192
    $region33: #{_shared_forward.1} parent=1 // pred_fallthru
      _
    %215 = vsyncpa [#allocation3], 1
    %216 = vsyncpa [#allocation6], 1
    %217 = vsyncpa [#allocation4], 1

</llo_original>
